<compile_context>
chip_gen: v7x
topology: tpu7x:2x2x1
jax: 0.10.0
libtpu: 0.0.40
codegen_flags: <defaults>
</compile_context>

<pallas_src>
import math
import functools

import jax
import jax.numpy as jnp
from jax.experimental import pallas as pl
from jax.experimental.pallas import tpu as pltpu


def fourier_features_kernel(x_ref, w_ref, o_ref, *, half):
    # x_ref: (TB, in_features) VMEM tile
    # w_ref: (in_features, half) VMEM tile, 2*pi already folded in (resident)
    # o_ref: (TB, 2*half) VMEM tile
    x = x_ref[...]
    w = w_ref[...]
    # f = x @ (2*pi*W^T)  -> MXU matmul with f32 accumulation, no transpose needed.
    f = jnp.dot(x, w, preferred_element_type=jnp.float32)     # (TB, half) f32
    # Write the two halves directly (no concatenate temporary).
    o_ref[:, :half] = jnp.cos(f).astype(o_ref.dtype)
    o_ref[:, half:] = jnp.sin(f).astype(o_ref.dtype)


def fourier_features(x, weight, *, out_dtype=None):
    """x: (B, in_features), weight: (half, in_features) -> (B, 2*half)."""
    B, in_features = x.shape
    half, in_w = weight.shape
    assert in_w == in_features
    out_features = 2 * half
    if out_dtype is None:
        out_dtype = x.dtype

    # One-time tiny op in the wrapper: fold 2*pi and transpose so the MXU sees
    # (in_features, half) with the lane dim = half, and the kernel does no
    # transpose / scale work per tile.
    w_t = (2.0 * math.pi) * jnp.transpose(weight)              # (in_features, half)

    # --- pick batch tile size TB (multiple of 8, <= ~1024 rows) against a
    # conservative VMEM working-set budget (safe for v5e/v6e/v7x).
    in_row_bytes = in_features * jnp.dtype(x.dtype).itemsize
    out_row_bytes = out_features * jnp.dtype(out_dtype).itemsize
    w_bytes = in_features * half * jnp.dtype(w_t.dtype).itemsize
    budget = 24 * 1024 * 1024                                  # working-set budget
    per_row = 2 * (in_row_bytes + out_row_bytes)               # double-buffered x + out
    max_rows = max(8, (budget - 2 * w_bytes) // max(per_row, 1))
    b_rounded = ((B + 7) // 8) * 8
    TB = int(min(1024, max_rows, b_rounded))
    TB = max(8, (TB // 8) * 8)

    kernel = functools.partial(fourier_features_kernel, half=half)

    return pl.pallas_call(
        kernel,
        out_shape=jax.ShapeDtypeStruct((B, out_features), out_dtype),
        grid_spec=pltpu.PrefetchScalarGridSpec(
            num_scalar_prefetch=0,
            grid=(pl.cdiv(B, TB),),
            in_specs=[
                pl.BlockSpec((TB, in_features), lambda i: (i, 0)),
                # Weight stays resident (same block every grid step).
                pl.BlockSpec((in_features, half), lambda i: (0, 0)),
            ],
            out_specs=pl.BlockSpec((TB, out_features), lambda i: (i, 0)),
        ),
        compiler_params=pltpu.CompilerParams(
            # Rows are independent -> shard the batch axis across TCs (v7x megacore).
            dimension_semantics=("parallel",),
            # Explicit limit so the scoped-VMEM default (16/32 MiB) never silently
            # cuts buffering depth; stays well under v7x's 64 MiB physical.
            vmem_limit_bytes=48 * 1024 * 1024,
        ),
    )(x, w_t)


def fourier_features_ref(x, weight):
    f = 2.0 * math.pi * jnp.dot(x, weight.T)
    return jnp.concatenate([jnp.cos(f), jnp.sin(f)], axis=-1)


if __name__ == "__main__":
    key = jax.random.PRNGKey(0)
    k_x, k_w = jax.random.split(key)

    B = 16
    in_features = 16
    out_features = 64          # must be even
    half = out_features // 2
    std = 1.0

    # Deterministic parameter init (matches init.normal(half, in_features, stddev=std)).
    weight = std * jax.random.normal(k_w, (half, in_features), dtype=jnp.float32)
    x = jax.random.normal(k_x, (B, in_features), dtype=jnp.float32)

    out = fourier_features(x, weight)
    out = jax.block_until_ready(out)

    ref = fourier_features_ref(x, weight)
    assert out.shape == (B, out_features), out.shape
    assert jnp.allclose(out, ref, atol=1e-4, rtol=1e-4), "mismatch vs reference"

    print("KERNEL_OK")
</pallas_src>

<mosaic_0001>
module attributes {stable_mosaic.version = 11 : i64} {
  func.func @fourier_features_kernel(%arg0: i32, %arg1: memref<16x16xf32, #tpu.memory_space<vmem>>, %arg2: memref<16x32xf32, #tpu.memory_space<vmem>>, %arg3: memref<16x64xf32, #tpu.memory_space<vmem>>) attributes {dimension_semantics = [#tpu.dimension_semantics<parallel>], iteration_bounds = array<i64: 1>, scalar_prefetch = 0 : i64, scratch_operands = 0 : i64, tpu.core_type = #tpu.core_type<tc>, window_params = [{transform_indices = @transform_0, window_bounds = array<i64: 16, 16>}, {pipeline_mode = #tpu.pipeline_mode<synchronous>, transform_indices = @transform_1, window_bounds = array<i64: 16, 32>}, {transform_indices = @transform_2, window_bounds = array<i64: 16, 64>}]} {
    %c0 = arith.constant 0 : index
    %c0_0 = arith.constant 0 : index
    %0 = vector.load %arg1[%c0, %c0_0] : memref<16x16xf32, #tpu.memory_space<vmem>>, vector<16x16xf32>
    %c0_1 = arith.constant 0 : index
    %c0_2 = arith.constant 0 : index
    %1 = vector.load %arg2[%c0_1, %c0_2] : memref<16x32xf32, #tpu.memory_space<vmem>>, vector<16x32xf32>
    %cst = arith.constant dense<0.000000e+00> : vector<16x32xf32>
    %2 = tpu.matmul %0, %1, %cst {dimension_numbers = #tpu.dot_dimension_numbers<[1], [0], [0], [1], [0, 0, 1, 1], [], []>} : vector<16x16xf32>, vector<16x32xf32>, vector<16x32xf32> -> vector<16x32xf32>
    %3 = math.cos %2 : vector<16x32xf32>
    %c0_3 = arith.constant 0 : index
    %c0_4 = arith.constant 0 : index
    %4 = vector.load %arg3[%c0_3, %c0_4] : memref<16x64xf32, #tpu.memory_space<vmem>>, vector<16x32xf32>
    tpu.vector_store %arg3[%c0_3, %c0_4], %3 {strides = array<i32>} : memref<16x64xf32, #tpu.memory_space<vmem>>, vector<16x32xf32>,
    %5 = math.sin %2 : vector<16x32xf32>
    %c0_5 = arith.constant 0 : index
    %c32 = arith.constant 32 : index
    %6 = vector.load %arg3[%c0_5, %c32] : memref<16x64xf32, #tpu.memory_space<vmem>>, vector<16x32xf32>
    tpu.vector_store %arg3[%c0_5, %c32], %5 {strides = array<i32>} : memref<16x64xf32, #tpu.memory_space<vmem>>, vector<16x32xf32>,
    return
  }
  func.func @transform_0(%arg0: i32) -> (i32, i32) {
    %c0_i32 = arith.constant 0 : i32
    %c0_i32_0 = arith.constant 0 : i32
    return %arg0, %c0_i32 : i32, i32
  }
  func.func @transform_1(%arg0: i32) -> (i32, i32) {
    %c0_i32 = arith.constant 0 : i32
    %c0_i32_0 = arith.constant 0 : i32
    %c0_i32_1 = arith.constant 0 : i32
    return %c0_i32, %c0_i32_0 : i32, i32
  }
  func.func @transform_2(%arg0: i32) -> (i32, i32) {
    %c0_i32 = arith.constant 0 : i32
    %c0_i32_0 = arith.constant 0 : i32
    return %arg0, %c0_i32 : i32, i32
  }
}

</mosaic_0001>

<llo_original>
// kernel: tpu_custom_call.1
$region0: #{tpu_custom_call.1}
  #allocation0 [shape = 'u32[]', space=smem, size = 0x4, offset = 0x4, fixed_abs, tag = 'smem constant byte address 0x4 - core index']
  #allocation1 [shape = 'u32[144,128]{1,0:T(1,128)}', space=vmem, size = 0x12000, scoped, tag = 'internal scratch']
  %s0 = inlined_call_operand.hbm [shape: f32[16,16], index: 0, kind: input, shape index: {}]
  %s1 = inlined_call_operand.hbm [shape: f32[16,32], index: 1, kind: input, shape index: {}]
  %s2 = inlined_call_operand.hbm [shape: f32[16,64], index: 2, kind: output, shape index: {}]
  %s3 = sld [smem:[#allocation0]]
  $region26: #{tpu_custom_call.1} parent=0
    _
  %s5 = ssub.s32 1, %s3
  %s6 = scalar_select 0, %s5, %s3
  $region1: #{tpu_custom_call.1} parent=0
    #allocation2 [shape = 'u8[8192]{0}', space=vmem, size = 0x2000, scoped, tag = 'input window, operand 0, single buffered']
    #allocation3 [shape = 's32[1]{0}', space=sflag, size = 0x4, scoped, tag = 'scoped memory for tpu_custom_call.1']
    #allocation4 [shape = 's32[1]{0}', space=sflag, size = 0x4, scoped, tag = 'scoped memory for tpu_custom_call.1']
    #allocation5 [shape = 'u8[8192]{0}', space=vmem, size = 0x2000, scoped, tag = 'input window, operand 1, single buffered']
    #allocation6 [shape = 's32[1]{0}', space=sflag, size = 0x4, scoped, tag = 'scoped memory for tpu_custom_call.1']
    #allocation7 [shape = 'u8[8192]{0}', space=vmem, size = 0x2000, scoped, tag = 'output window, operand 0, single buffered']
    %7 = vsyncpa [#allocation3], 0
    %8 = vsyncpa [#allocation6], 0
    %9 = vsyncpa [#allocation4], 0
    // Predicated region
    $region2: #{tpu_custom_call.1} parent=1 // pred_check
      _
    $region3: #{tpu_custom_call.1} parent=1 // pred_check_branch
      %11 = sbr.rel (0) target = $region5
    $region4: #{tpu_custom_call.1} parent=1 // pred_region
      %s13 = ssub.s32 256, 256
      %14 = vsyncadd [#allocation3], %s13
      %s15 = sshll.u32 [#allocation2], 4
      %s16 = int_to_ptr.vmem [resolvable:$true] %s15
      %21 = dma.hbm_to_vmem [thread:$0]  %s0, 256, %s16, [#allocation3], 128, 128, 8
    $region5: #{tpu_custom_call.1} parent=1 // pred_fallthru
      _
    // Predicated region
    $region6: #{tpu_custom_call.1} parent=1 // pred_check
      _
    $region7: #{tpu_custom_call.1} parent=1 // pred_check_branch
      %23 = sbr.rel (0) target = $region9
    $region8: #{tpu_custom_call.1} parent=1 // pred_region
      %s25 = ssub.s32 256, 256
      %26 = vsyncadd [#allocation6], %s25
      %s27 = sshll.u32 [#allocation5], 4
      %s28 = int_to_ptr.vmem [resolvable:$true] %s27
      %33 = dma.hbm_to_vmem [thread:$0]  %s1, 256, %s28, [#allocation6], 128, 128, 8
    $region9: #{tpu_custom_call.1} parent=1 // pred_fallthru
      _
    // Predicated region
    $region10: #{tpu_custom_call.1} parent=1 // pred_check
      _
    $region11: #{tpu_custom_call.1} parent=1 // pred_check_branch
      %35 = sbr.rel (0) target = $region13
    $region12: #{tpu_custom_call.1} parent=1 // pred_region
      %36 = dma.done [#allocation3], 256
    $region13: #{tpu_custom_call.1} parent=1 // pred_fallthru
      _
    // Predicated region
    $region14: #{tpu_custom_call.1} parent=1 // pred_check
      _
    $region15: #{tpu_custom_call.1} parent=1 // pred_check_branch
      %38 = sbr.rel (0) target = $region17
    $region16: #{tpu_custom_call.1} parent=1 // pred_region
      %39 = dma.done [#allocation6], 256
    $region17: #{tpu_custom_call.1} parent=1 // pred_fallthru
      _
    %v40 = vld [vmem:[#allocation2] sm:$0xff]
    %v41 = vld [vmem:[#allocation2 + $0x8] sm:$0xff]
    %v42 = vld [vmem:[#allocation5] sm:$0xff]
    %v43 = vld [vmem:[#allocation5 + $0x8] sm:$0xff]
    %vm44 = vcmask 130048
    %v46 = vsel %vm44, %v40, 0
    %v49 = vsel %vm44, %v41, 0
    %51 = vmatprep.subr.mxu0 0.0
    %52 = vmatpush1.msra.mxu0 %v42
    %53 = vmatprep.subr.mxu0 0.0
    %54 = vmatpush1.msra.mxu0 %v43
    %55 = vmatprep.subr.mxu0 0.0
    %56 = vmatpush1.msra.mxu0 0.0
    %57 = vmatprep.subr.mxu0 0.0
    %58 = vmatpush1.msra.mxu0 0.0
    %59 = vmatprep.subr.mxu0 0.0
    %60 = vmatpush1.msra.mxu0 0.0
    %61 = vmatprep.subr.mxu0 0.0
    %62 = vmatpush1.msra.mxu0 0.0
    %63 = vmatprep.subr.mxu0 0.0
    %64 = vmatpush1.msra.mxu0 0.0
    %65 = vmatprep.subr.mxu0 0.0
    %66 = vmatpush1.msra.mxu0 0.0
    %67 = vmatprep.subr.mxu0 0.0
    %68 = vmatpush1.msra.mxu0 0.0
    %69 = vmatprep.subr.mxu0 0.0
    %70 = vmatpush1.msra.mxu0 0.0
    %71 = vmatprep.subr.mxu0 0.0
    %72 = vmatpush1.msra.mxu0 0.0
    %73 = vmatprep.subr.mxu0 0.0
    %74 = vmatpush1.msra.mxu0 0.0
    %75 = vmatprep.subr.mxu0 0.0
    %76 = vmatpush1.msra.mxu0 0.0
    %77 = vmatprep.subr.mxu0 0.0
    %78 = vmatpush1.msra.mxu0 0.0
    %79 = vmatprep.subr.mxu0 0.0
    %80 = vmatpush1.msra.mxu0 0.0
    %81 = vmatprep.subr.mxu0 0.0
    %82 = vmatpush1.msra.mxu0 0.0
    %83 = vmatprep.subr.mxu0 0.0
    %84 = vmatpush1.msra.mxu0 0.0
    %85 = vmatprep.subr.mxu0 0.0
    %86 = vmatpush1.msra.mxu0 0.0
    %87 = vmatprep.subr.mxu0 0.0
    %88 = vmatpush1.msra.mxu0 0.0
    %89 = vmatprep.subr.mxu0 0.0
    %90 = vmatpush1.msra.mxu0 0.0
    %91 = vmatprep.subr.mxu0 0.0
    %92 = vmatpush1.msra.mxu0 0.0
    %93 = vmatprep.subr.mxu0 0.0
    %94 = vmatpush1.msra.mxu0 0.0
    %95 = vmatprep.subr.mxu0 0.0
    %96 = vmatpush1.msra.mxu0 0.0
    %97 = vmatprep.subr.mxu0 0.0
    %98 = vmatpush1.msra.mxu0 0.0
    %99 = vmatprep.subr.mxu0 0.0
    %100 = vmatpush1.msra.mxu0 0.0
    %101 = vmatprep.subr.mxu0 0.0
    %102 = vmatpush1.msra.mxu0 0.0
    %103 = vmatprep.subr.mxu0 0.0
    %104 = vmatpush1.msra.mxu0 0.0
    %105 = vmatprep.subr.mxu0 0.0
    %106 = vmatpush1.msra.mxu0 0.0
    %107 = vmatprep.subr.mxu0 0.0
    %108 = vmatpush1.msra.mxu0 0.0
    %109 = vmatprep.subr.mxu0 0.0
    %110 = vmatpush1.msra.mxu0 0.0
    %111 = vmatprep.subr.mxu0 0.0
    %112 = vmatpush1.msra.mxu0 0.0
    %113 = vmatprep.subr.mxu0 0.0
    %114 = vmatpush1.msra.mxu0 0.0
    %115 = vmatprep.mubr.f32.mxu0 0.0
    %116 = vmatmul.mubr.f32.gmra.mrb[0].mxu0 %v46
    %v117 = vpop.f32.mrb[0].mxu0
    %v118 = vadd.f32 0.0, %v117
    %v119 = vpop.f32.mrb[0].mxu0
    %120 = vmatprep.mubr.f32.mxu0 0.0
    %121 = vmatmul.mubr.f32.gmra.mrb[0].mxu0 %v49
    %v122 = vpop.f32.mrb[0].mxu0
    %v123 = vadd.f32 0.0, %v122
    %v124 = vpop.f32.mrb[0].mxu0
    %125 = vdwg.mxu0
    %v126 = vand.u32 2147483647, %v118
    %vm127 = vcmp.le.f32.partialorder %v126, 0.7853982
    %vm128 = vcmp.lt.s32.totalorder %v118, 0
    %v129 = vand.u32 %v118, 2139095040
    %v130 = vshrl.u32 %v129, 23
    %v131 = vsub.s32 %v130, 127
    %v132 = vand.u32 2147483647, %v118
    %v133 = vand.u32 %v132, 8388607
    %v134 = vor.u32 %v133, 8388608
    %v135 = vsub.s32 0, %v134
    %v136 = vadd.s32 %v131, 1
    %vm137 = vcmp.gt.s32.totalorder %v136, 0
    %v138 = vsel %vm137, %v136, 0
    %v139 = vshrl.u32 %v138, 5
    %v140 = vand.u32 %v138, 31
    %v141 = vsub.s32 32, %v140
    %v142 = vshrl.u32 683565275, %v141
    %v143 = vshll.u32 683565275, %v140
    %v144 = vshrl.u32 2475754826, %v141
    %v145 = vor.u32 %v143, %v144
    %v146 = vshll.u32 2475754826, %v140
    %v147 = vshrl.u32 2131351028, %v141
    %v148 = vor.u32 %v146, %v147
    %v149 = vshll.u32 2131351028, %v140
    %v150 = vshrl.u32 2102212464, %v141
    %v151 = vor.u32 %v149, %v150
    %v152 = vshll.u32 2102212464, %v140
    %v153 = vshrl.u32 920167782, %v141
    %v154 = vor.u32 %v152, %v153
    %v155 = vshll.u32 920167782, %v140
    %v156 = vshrl.u32 1326507024, %v141
    %v157 = vor.u32 %v155, %v156
    %vm158 = vcmp.lt.s32.totalorder %v139, 1
    %vm159 = vcmp.lt.s32.totalorder %v139, 2
    %vm160 = vcmp.lt.s32.totalorder %v139, 3
    %vm161 = vcmp.lt.s32.totalorder %v139, 4
    %v162 = vsel %vm158, %v142, %v145
    %v163 = vsel %vm161, %v151, 2102212464
    %v164 = vsel %vm160, %v148, %v163
    %v165 = vsel %vm159, %v162, %v164
    %v166 = vsel %vm158, %v145, %v148
    %v167 = vsel %vm161, %v154, 920167782
    %v168 = vsel %vm160, %v151, %v167
    %v169 = vsel %vm159, %v166, %v168
    %v170 = vsel %vm158, %v148, %v151
    %v171 = vsel %vm161, %v157, 1326507024
    %v172 = vsel %vm160, %v154, %v171
    %v173 = vsel %vm159, %v170, %v172
    %v174 = vshll.u32 %v134, 8
    %v175 = vmul.u32.u64.compose %v174, %v173
    %v176 = vextract.low.u32 %v175
    %v177 = vextract.high.u32 %v175
    %v178 = vmul.u32.u64.compose %v174, %v169
    %v179 = vextract.low.u32 %v178
    %v180 = vextract.high.u32 %v178
    %v181 = vmul.u32 %v174, %v165
    %v182 = vadd.s32 %v177, %v179
    %vm183 = vc.u32 %v177, %v179
    %v184 = vadd.s32 %v180, 1
    %v185 = vsel %vm183, %v184, %v180
    %v186 = vadd.s32 %v181, %v185
    %v187 = vadd.s32 %v186, 536870912
    %v188 = vshrl.u32 %v187, 30
    %v189 = vshll.u32 %v188, 30
    %v190 = vsub.s32 %v186, %v189
    %vm191 = vcmp.lt.s32.totalorder %v190, 0
    %v192 = vsub.s32 0, %v190
    %v193 = vsel %vm191, %v192, %v190
    %v194 = vclz %v193
    %v195 = vsub.s32 %v194, 2
    %vm196 = vcmp.gt.s32.totalorder 0, %v195
    %v197 = vsel %vm196, 0, %v195
    %v198 = vsub.s32 32, %v197
    %v199 = vshll.u32 %v190, %v197
    %v200 = vshrl.u32 %v182, %v198
    %v201 = vor.u32 %v199, %v200
    %v202 = vsub.s32 4294967266, %v197
    %v203 = vadd.s32 %v202, 127
    %v204 = vshll.u32 %v203, 23
    %v205 = vor.u32 4788187, %v204
    %v206 = vand.u32 2147483647, %v205
    %v208 = vcvt.s32.f32 %v201
    %v209 = vmul.f32 %v208, %v206
    %v210 = vxor.u32 %v209, 2147483648
    %v211 = vsel %vm128, %v210, %v209
    %v212 = vsub.s32 4, %v188
    %v213 = vsel %vm128, %v212, %v188
    %v214 = vsel %vm127, %v118, %v211
    %v215 = vsel %vm127, 0, %v213
    %v216 = vcosq.f32.pop %v214
    %v217 = vsinq.f32.pop %v214
    %vm218 = vweird.f32 %v118
    %v219 = vand.u32 %v215, 3
    %vm220 = vcmp.lt.s32.totalorder %v219, 2
    %vm221 = vcmp.eq.s32.totalorder %v219, 0
    %v222 = vxor.u32 %v217, 2147483648
    %v223 = vsel %vm221, %v216, %v222
    %vm224 = vcmp.eq.s32.totalorder %v219, 2
    %v225 = vxor.u32 %v216, 2147483648
    %v226 = vsel %vm224, %v225, %v217
    %v227 = vsel %vm220, %v223, %v226
    %v228 = vsel %vm218, nan, %v227
    %v229 = vand.u32 2147483647, %v123
    %vm230 = vcmp.le.f32.partialorder %v229, 0.7853982
    %vm231 = vcmp.lt.s32.totalorder %v123, 0
    %v232 = vand.u32 %v123, 2139095040
    %v233 = vshrl.u32 %v232, 23
    %v234 = vsub.s32 %v233, 127
    %v235 = vand.u32 2147483647, %v123
    %v236 = vand.u32 %v235, 8388607
    %v237 = vor.u32 %v236, 8388608
    %v238 = vsub.s32 0, %v237
    %v239 = vadd.s32 %v234, 1
    %vm240 = vcmp.gt.s32.totalorder %v239, 0
    %v241 = vsel %vm240, %v239, 0
    %v242 = vshrl.u32 %v241, 5
    %v243 = vand.u32 %v241, 31
    %v244 = vsub.s32 32, %v243
    %v245 = vshrl.u32 683565275, %v244
    %v246 = vshll.u32 683565275, %v243
    %v247 = vshrl.u32 2475754826, %v244
    %v248 = vor.u32 %v246, %v247
    %v249 = vshll.u32 2475754826, %v243
    %v250 = vshrl.u32 2131351028, %v244
    %v251 = vor.u32 %v249, %v250
    %v252 = vshll.u32 2131351028, %v243
    %v253 = vshrl.u32 2102212464, %v244
    %v254 = vor.u32 %v252, %v253
    %v255 = vshll.u32 2102212464, %v243
    %v256 = vshrl.u32 920167782, %v244
    %v257 = vor.u32 %v255, %v256
    %v258 = vshll.u32 920167782, %v243
    %v259 = vshrl.u32 1326507024, %v244
    %v260 = vor.u32 %v258, %v259
    %vm261 = vcmp.lt.s32.totalorder %v242, 1
    %vm262 = vcmp.lt.s32.totalorder %v242, 2
    %vm263 = vcmp.lt.s32.totalorder %v242, 3
    %vm264 = vcmp.lt.s32.totalorder %v242, 4
    %v265 = vsel %vm261, %v245, %v248
    %v266 = vsel %vm264, %v254, 2102212464
    %v267 = vsel %vm263, %v251, %v266
    %v268 = vsel %vm262, %v265, %v267
    %v269 = vsel %vm261, %v248, %v251
    %v270 = vsel %vm264, %v257, 920167782
    %v271 = vsel %vm263, %v254, %v270
    %v272 = vsel %vm262, %v269, %v271
    %v273 = vsel %vm261, %v251, %v254
    %v274 = vsel %vm264, %v260, 1326507024
    %v275 = vsel %vm263, %v257, %v274
    %v276 = vsel %vm262, %v273, %v275
    %v277 = vshll.u32 %v237, 8
    %v278 = vmul.u32.u64.compose %v277, %v276
    %v279 = vextract.low.u32 %v278
    %v280 = vextract.high.u32 %v278
    %v281 = vmul.u32.u64.compose %v277, %v272
    %v282 = vextract.low.u32 %v281
    %v283 = vextract.high.u32 %v281
    %v284 = vmul.u32 %v277, %v268
    %v285 = vadd.s32 %v280, %v282
    %vm286 = vc.u32 %v280, %v282
    %v287 = vadd.s32 %v283, 1
    %v288 = vsel %vm286, %v287, %v283
    %v289 = vadd.s32 %v284, %v288
    %v290 = vadd.s32 %v289, 536870912
    %v291 = vshrl.u32 %v290, 30
    %v292 = vshll.u32 %v291, 30
    %v293 = vsub.s32 %v289, %v292
    %vm294 = vcmp.lt.s32.totalorder %v293, 0
    %v295 = vsub.s32 0, %v293
    %v296 = vsel %vm294, %v295, %v293
    %v297 = vclz %v296
    %v298 = vsub.s32 %v297, 2
    %vm299 = vcmp.gt.s32.totalorder 0, %v298
    %v300 = vsel %vm299, 0, %v298
    %v301 = vsub.s32 32, %v300
    %v302 = vshll.u32 %v293, %v300
    %v303 = vshrl.u32 %v285, %v301
    %v304 = vor.u32 %v302, %v303
    %v305 = vsub.s32 4294967266, %v300
    %v306 = vadd.s32 %v305, 127
    %v307 = vshll.u32 %v306, 23
    %v308 = vor.u32 4788187, %v307
    %v309 = vand.u32 2147483647, %v308
    %v311 = vcvt.s32.f32 %v304
    %v312 = vmul.f32 %v311, %v309
    %v313 = vxor.u32 %v312, 2147483648
    %v314 = vsel %vm231, %v313, %v312
    %v315 = vsub.s32 4, %v291
    %v316 = vsel %vm231, %v315, %v291
    %v317 = vsel %vm230, %v123, %v314
    %v318 = vsel %vm230, 0, %v316
    %v319 = vcosq.f32.pop %v317
    %v320 = vsinq.f32.pop %v317
    %vm321 = vweird.f32 %v123
    %v322 = vand.u32 %v318, 3
    %vm323 = vcmp.lt.s32.totalorder %v322, 2
    %vm324 = vcmp.eq.s32.totalorder %v322, 0
    %v325 = vxor.u32 %v320, 2147483648
    %v326 = vsel %vm324, %v319, %v325
    %vm327 = vcmp.eq.s32.totalorder %v322, 2
    %v328 = vxor.u32 %v319, 2147483648
    %v329 = vsel %vm327, %v328, %v320
    %v330 = vsel %vm323, %v326, %v329
    %v331 = vsel %vm321, nan, %v330
    %vm332 = vcmask 261120
    %333 = vst.msk [vmem:[#allocation7] sm:$0xff] %vm332, %v228
    %334 = vst.msk [vmem:[#allocation7 + $0x8] sm:$0xff] %vm332, %v331
    %v335 = vand.u32 2147483647, %v118
    %vm336 = vcmp.le.f32.partialorder %v335, 0.7853982
    %vm337 = vcmp.lt.s32.totalorder %v118, 0
    %v338 = vand.u32 %v118, 2139095040
    %v339 = vshrl.u32 %v338, 23
    %v340 = vsub.s32 %v339, 127
    %v341 = vand.u32 2147483647, %v118
    %v342 = vand.u32 %v341, 8388607
    %v343 = vor.u32 %v342, 8388608
    %v344 = vsub.s32 0, %v343
    %v345 = vadd.s32 %v340, 1
    %vm346 = vcmp.gt.s32.totalorder %v345, 0
    %v347 = vsel %vm346, %v345, 0
    %v348 = vshrl.u32 %v347, 5
    %v349 = vand.u32 %v347, 31
    %v350 = vsub.s32 32, %v349
    %v351 = vshrl.u32 683565275, %v350
    %v352 = vshll.u32 683565275, %v349
    %v353 = vshrl.u32 2475754826, %v350
    %v354 = vor.u32 %v352, %v353
    %v355 = vshll.u32 2475754826, %v349
    %v356 = vshrl.u32 2131351028, %v350
    %v357 = vor.u32 %v355, %v356
    %v358 = vshll.u32 2131351028, %v349
    %v359 = vshrl.u32 2102212464, %v350
    %v360 = vor.u32 %v358, %v359
    %v361 = vshll.u32 2102212464, %v349
    %v362 = vshrl.u32 920167782, %v350
    %v363 = vor.u32 %v361, %v362
    %v364 = vshll.u32 920167782, %v349
    %v365 = vshrl.u32 1326507024, %v350
    %v366 = vor.u32 %v364, %v365
    %vm367 = vcmp.lt.s32.totalorder %v348, 1
    %vm368 = vcmp.lt.s32.totalorder %v348, 2
    %vm369 = vcmp.lt.s32.totalorder %v348, 3
    %vm370 = vcmp.lt.s32.totalorder %v348, 4
    %v371 = vsel %vm367, %v351, %v354
    %v372 = vsel %vm370, %v360, 2102212464
    %v373 = vsel %vm369, %v357, %v372
    %v374 = vsel %vm368, %v371, %v373
    %v375 = vsel %vm367, %v354, %v357
    %v376 = vsel %vm370, %v363, 920167782
    %v377 = vsel %vm369, %v360, %v376
    %v378 = vsel %vm368, %v375, %v377
    %v379 = vsel %vm367, %v357, %v360
    %v380 = vsel %vm370, %v366, 1326507024
    %v381 = vsel %vm369, %v363, %v380
    %v382 = vsel %vm368, %v379, %v381
    %v383 = vshll.u32 %v343, 8
    %v384 = vmul.u32.u64.compose %v383, %v382
    %v385 = vextract.low.u32 %v384
    %v386 = vextract.high.u32 %v384
    %v387 = vmul.u32.u64.compose %v383, %v378
    %v388 = vextract.low.u32 %v387
    %v389 = vextract.high.u32 %v387
    %v390 = vmul.u32 %v383, %v374
    %v391 = vadd.s32 %v386, %v388
    %vm392 = vc.u32 %v386, %v388
    %v393 = vadd.s32 %v389, 1
    %v394 = vsel %vm392, %v393, %v389
    %v395 = vadd.s32 %v390, %v394
    %v396 = vadd.s32 %v395, 536870912
    %v397 = vshrl.u32 %v396, 30
    %v398 = vshll.u32 %v397, 30
    %v399 = vsub.s32 %v395, %v398
    %vm400 = vcmp.lt.s32.totalorder %v399, 0
    %v401 = vsub.s32 0, %v399
    %v402 = vsel %vm400, %v401, %v399
    %v403 = vclz %v402
    %v404 = vsub.s32 %v403, 2
    %vm405 = vcmp.gt.s32.totalorder 0, %v404
    %v406 = vsel %vm405, 0, %v404
    %v407 = vsub.s32 32, %v406
    %v408 = vshll.u32 %v399, %v406
    %v409 = vshrl.u32 %v391, %v407
    %v410 = vor.u32 %v408, %v409
    %v411 = vsub.s32 4294967266, %v406
    %v412 = vadd.s32 %v411, 127
    %v413 = vshll.u32 %v412, 23
    %v414 = vor.u32 4788187, %v413
    %v415 = vand.u32 2147483647, %v414
    %v417 = vcvt.s32.f32 %v410
    %v418 = vmul.f32 %v417, %v415
    %v419 = vxor.u32 %v418, 2147483648
    %v420 = vsel %vm337, %v419, %v418
    %v421 = vsub.s32 4, %v397
    %v422 = vsel %vm337, %v421, %v397
    %v423 = vsel %vm336, %v118, %v420
    %v424 = vsel %vm336, 0, %v422
    %v425 = vcosq.f32.pop %v423
    %v426 = vsinq.f32.pop %v423
    %vm427 = vweird.f32 %v118
    %v428 = vadd.s32 %v424, 3
    %v429 = vand.u32 %v428, 3
    %vm430 = vcmp.lt.s32.totalorder %v429, 2
    %vm431 = vcmp.eq.s32.totalorder %v429, 0
    %v432 = vxor.u32 %v426, 2147483648
    %v433 = vsel %vm431, %v425, %v432
    %vm434 = vcmp.eq.s32.totalorder %v429, 2
    %v435 = vxor.u32 %v425, 2147483648
    %v436 = vsel %vm434, %v435, %v426
    %v437 = vsel %vm430, %v433, %v436
    %v438 = vsel %vm427, nan, %v437
    %v439 = vand.u32 2147483647, %v123
    %vm440 = vcmp.le.f32.partialorder %v439, 0.7853982
    %vm441 = vcmp.lt.s32.totalorder %v123, 0
    %v442 = vand.u32 %v123, 2139095040
    %v443 = vshrl.u32 %v442, 23
    %v444 = vsub.s32 %v443, 127
    %v445 = vand.u32 2147483647, %v123
    %v446 = vand.u32 %v445, 8388607
    %v447 = vor.u32 %v446, 8388608
    %v448 = vsub.s32 0, %v447
    %v449 = vadd.s32 %v444, 1
    %vm450 = vcmp.gt.s32.totalorder %v449, 0
    %v451 = vsel %vm450, %v449, 0
    %v452 = vshrl.u32 %v451, 5
    %v453 = vand.u32 %v451, 31
    %v454 = vsub.s32 32, %v453
    %v455 = vshrl.u32 683565275, %v454
    %v456 = vshll.u32 683565275, %v453
    %v457 = vshrl.u32 2475754826, %v454
    %v458 = vor.u32 %v456, %v457
    %v459 = vshll.u32 2475754826, %v453
    %v460 = vshrl.u32 2131351028, %v454
    %v461 = vor.u32 %v459, %v460
    %v462 = vshll.u32 2131351028, %v453
    %v463 = vshrl.u32 2102212464, %v454
    %v464 = vor.u32 %v462, %v463
    %v465 = vshll.u32 2102212464, %v453
    %v466 = vshrl.u32 920167782, %v454
    %v467 = vor.u32 %v465, %v466
    %v468 = vshll.u32 920167782, %v453
    %v469 = vshrl.u32 1326507024, %v454
    %v470 = vor.u32 %v468, %v469
    %vm471 = vcmp.lt.s32.totalorder %v452, 1
    %vm472 = vcmp.lt.s32.totalorder %v452, 2
    %vm473 = vcmp.lt.s32.totalorder %v452, 3
    %vm474 = vcmp.lt.s32.totalorder %v452, 4
    %v475 = vsel %vm471, %v455, %v458
    %v476 = vsel %vm474, %v464, 2102212464
    %v477 = vsel %vm473, %v461, %v476
    %v478 = vsel %vm472, %v475, %v477
    %v479 = vsel %vm471, %v458, %v461
    %v480 = vsel %vm474, %v467, 920167782
    %v481 = vsel %vm473, %v464, %v480
    %v482 = vsel %vm472, %v479, %v481
    %v483 = vsel %vm471, %v461, %v464
    %v484 = vsel %vm474, %v470, 1326507024
    %v485 = vsel %vm473, %v467, %v484
    %v486 = vsel %vm472, %v483, %v485
    %v487 = vshll.u32 %v447, 8
    %v488 = vmul.u32.u64.compose %v487, %v486
    %v489 = vextract.low.u32 %v488
    %v490 = vextract.high.u32 %v488
    %v491 = vmul.u32.u64.compose %v487, %v482
    %v492 = vextract.low.u32 %v491
    %v493 = vextract.high.u32 %v491
    %v494 = vmul.u32 %v487, %v478
    %v495 = vadd.s32 %v490, %v492
    %vm496 = vc.u32 %v490, %v492
    %v497 = vadd.s32 %v493, 1
    %v498 = vsel %vm496, %v497, %v493
    %v499 = vadd.s32 %v494, %v498
    %v500 = vadd.s32 %v499, 536870912
    %v501 = vshrl.u32 %v500, 30
    %v502 = vshll.u32 %v501, 30
    %v503 = vsub.s32 %v499, %v502
    %vm504 = vcmp.lt.s32.totalorder %v503, 0
    %v505 = vsub.s32 0, %v503
    %v506 = vsel %vm504, %v505, %v503
    %v507 = vclz %v506
    %v508 = vsub.s32 %v507, 2
    %vm509 = vcmp.gt.s32.totalorder 0, %v508
    %v510 = vsel %vm509, 0, %v508
    %v511 = vsub.s32 32, %v510
    %v512 = vshll.u32 %v503, %v510
    %v513 = vshrl.u32 %v495, %v511
    %v514 = vor.u32 %v512, %v513
    %v515 = vsub.s32 4294967266, %v510
    %v516 = vadd.s32 %v515, 127
    %v517 = vshll.u32 %v516, 23
    %v518 = vor.u32 4788187, %v517
    %v519 = vand.u32 2147483647, %v518
    %v521 = vcvt.s32.f32 %v514
    %v522 = vmul.f32 %v521, %v519
    %v523 = vxor.u32 %v522, 2147483648
    %v524 = vsel %vm441, %v523, %v522
    %v525 = vsub.s32 4, %v501
    %v526 = vsel %vm441, %v525, %v501
    %v527 = vsel %vm440, %v123, %v524
    %v528 = vsel %vm440, 0, %v526
    %v529 = vcosq.f32.pop %v527
    %v530 = vsinq.f32.pop %v527
    %vm531 = vweird.f32 %v123
    %v532 = vadd.s32 %v528, 3
    %v533 = vand.u32 %v532, 3
    %vm534 = vcmp.lt.s32.totalorder %v533, 2
    %vm535 = vcmp.eq.s32.totalorder %v533, 0
    %v536 = vxor.u32 %v530, 2147483648
    %v537 = vsel %vm535, %v529, %v536
    %vm538 = vcmp.eq.s32.totalorder %v533, 2
    %v539 = vxor.u32 %v529, 2147483648
    %v540 = vsel %vm538, %v539, %v530
    %v541 = vsel %vm534, %v537, %v540
    %v542 = vsel %vm531, nan, %v541
    %545 = vrot.lane.b32.xlu0 %v438, 32
    %v546 = vpop.permute.xlu0 %545
    %547 = vrot.lane.b32.xlu0 %v542, 32
    %v548 = vpop.permute.xlu0 %547
    %vm551 = vcmask 523520
    %552 = vst.msk [vmem:[#allocation7] sm:$0xff] %vm551, %v546
    %553 = vst.msk [vmem:[#allocation7 + $0x8] sm:$0xff] %vm551, %v548
    // Predicated region
    $region18: #{tpu_custom_call.1} parent=1 // pred_check
      _
    $region19: #{tpu_custom_call.1} parent=1 // pred_check_branch
      %555 = sbr.rel (0) target = $region21
    $region20: #{tpu_custom_call.1} parent=1 // pred_region
      %s557 = ssub.s32 256, 256
      %558 = vsyncadd [#allocation4], %s557
      %s559 = sshll.u32 [#allocation7], 4
      %s560 = int_to_ptr.vmem [resolvable:$true] %s559
      %565 = dma.vmem_to_hbm [thread:$0]  %s560, 256, %s2, [#allocation4], 128, 128, 8
    $region21: #{tpu_custom_call.1} parent=1 // pred_fallthru
      _
    // Predicated region
    $region22: #{tpu_custom_call.1} parent=1 // pred_check
      _
    $region23: #{tpu_custom_call.1} parent=1 // pred_check_branch
      %567 = sbr.rel (0) target = $region25
    $region24: #{tpu_custom_call.1} parent=1 // pred_region
      %568 = dma.done [#allocation4], 256
    $region25: #{tpu_custom_call.1} parent=1 // pred_fallthru
      _
    %569 = vsyncpa [#allocation3], 1
    %570 = vsyncpa [#allocation6], 1
    %571 = vsyncpa [#allocation4], 1

</llo_original>
